<compile_context>
chip_gen: v7x
topology: tpu7x:2x2x1
jax: 0.10.0
libtpu: 0.0.40
codegen_flags: <defaults>
</compile_context>

<pallas_src>
import jax
import jax.numpy as jnp
from jax.experimental import pallas as pl
from jax.experimental.pallas import tpu as pltpu

NUM_LABELS = 6
SMOOTH = 1.0  # Mean_IoU calls IoU_coef(..., smooth=1), overriding the 0.0001 default


def _chip_vmem_bytes():
    """Physical VMEM per TensorCore; falls back to 128 MiB (v5e/v6e) if unknown."""
    try:
        info = pltpu.get_tpu_info()
        for attr in ("vmem_capacity_bytes", "vmem_size_bytes", "vmem_bytes"):
            v = getattr(info, attr, None)
            if v:
                return int(v)
    except Exception:
        pass
    return 128 << 20


def mean_iou(y_pred, y_true, *, max_tile=None):
    """y_pred, y_true: NCHW arrays with C >= NUM_LABELS (any float/int dtype).

    Returns scalar float32. Inputs are streamed in their native dtype; keep the
    producers in bf16 / int8 masks for maximum HBM-bandwidth savings.
    """
    assert y_pred.shape == y_true.shape
    n, c, h, w = y_pred.shape
    assert c >= NUM_LABELS, "Mean_IoU hardcodes numLabels=6"
    hw = h * w

    # free reshape (contiguous); stream ALL channels — no slice copy in XLA
    yp = y_pred.reshape(n, c, hw)
    yt = y_true.reshape(n, c, hw)

    # ---- per-chip budgets -------------------------------------------------
    phys_vmem = _chip_vmem_bytes()
    if phys_vmem <= (64 << 20):        # v7x-class TC: 64 MiB physical VMEM
        vmem_cap = 48 << 20            # keep headroom below the physical ceiling
        chip_max_tile = 256 * 1024
    else:                              # v5e / v6e: 128 MiB VMEM
        vmem_cap = 64 << 20
        chip_max_tile = 384 * 1024
    if max_tile is None:
        max_tile = chip_max_tile

    itemsize = jnp.dtype(y_pred.dtype).itemsize + jnp.dtype(y_true.dtype).itemsize
    bytes_per_lane = c * itemsize
    # double-buffered inputs must fit under the cap (with headroom)
    tile_cap = max(128, (vmem_cap - (4 << 20)) // (2 * bytes_per_lane))
    hw_up = -(-hw // 128) * 128
    tile = min(max_tile, tile_cap, hw_up)
    tile = max(128, (tile // 128) * 128)

    total_steps = -(-hw // tile)

    # v7x: give the 2-TC split a real parallel axis even for N == 1 / odd N.
    # Harmless on v5e/v6e (at most one duplicated, fully-masked block).
    n_chunks = 2 if (n % 2 == 1 and total_steps >= 2) else 1
    spc = -(-total_steps // n_chunks)               # steps per chunk
    has_phantom = n_chunks * spc > total_steps
    needs_mask = has_phantom or (hw % tile != 0)

    def in_index(b, ch, k):
        g = ch * spc + k
        if has_phantom:
            g = jnp.minimum(g, total_steps - 1)     # keep the DMA window in range
        return (b, 0, g)

    def out_index(b, ch, k):
        return (b, ch, 0, 0)

    def kernel(yp_ref, yt_ref, out_ref, inter_acc, total_acc):
        ch = pl.program_id(1)
        k = pl.program_id(2)

        @pl.when(k == 0)
        def _init():
            inter_acc[...] = jnp.zeros_like(inter_acc)
            total_acc[...] = jnp.zeros_like(total_acc)

        # native-dtype stream, in-kernel upcast (hidden under DMA)
        ypv = yp_ref[...].astype(jnp.float32)       # (c, tile)
        ytv = yt_ref[...].astype(jnp.float32)

        if needs_mask:
            g = ch * spc + k
            limit = hw - g * tile                   # valid lanes in this block

            @pl.when(limit >= tile)                 # fast path: full block
            def _full():
                inter_acc[...] += jnp.sum(ytv * ypv, axis=1, keepdims=True)
                total_acc[...] += jnp.sum(ytv + ypv, axis=1, keepdims=True)

            @pl.when(limit < tile)                  # ragged / phantom block
            def _ragged():
                lane = jax.lax.broadcasted_iota(jnp.int32, (c, tile), 1)
                valid = lane < limit
                ypm = jnp.where(valid, ypv, 0.0)
                ytm = jnp.where(valid, ytv, 0.0)
                inter_acc[...] += jnp.sum(ytm * ypm, axis=1, keepdims=True)
                total_acc[...] += jnp.sum(ytm + ypm, axis=1, keepdims=True)
        else:
            inter_acc[...] += jnp.sum(ytv * ypv, axis=1, keepdims=True)
            total_acc[...] += jnp.sum(ytv + ypv, axis=1, keepdims=True)

        @pl.when(k == spc - 1)
        def _finalize():
            # per-(batch, chunk) partial sums; IoU/mean combine happens in JAX
            out_ref[:, 0:1] = inter_acc[...]
            out_ref[:, 1:2] = total_acc[...]

    block_bytes = c * tile * itemsize
    vmem_limit = int(min(vmem_cap, max(32 << 20, 2 * block_bytes + (4 << 20))))

    sums = pl.pallas_call(
        kernel,
        out_shape=jax.ShapeDtypeStruct((n, n_chunks, c, 2), jnp.float32),
        grid_spec=pltpu.PrefetchScalarGridSpec(
            num_scalar_prefetch=0,
            grid=(n, n_chunks, spc),
            in_specs=[
                pl.BlockSpec((None, c, tile), in_index),
                pl.BlockSpec((None, c, tile), in_index),
            ],
            out_specs=pl.BlockSpec((None, None, c, 2), out_index),
            scratch_shapes=[
                pltpu.VMEM((c, 1), jnp.float32),
                pltpu.VMEM((c, 1), jnp.float32),
            ],
        ),
        compiler_params=pltpu.CompilerParams(
            dimension_semantics=("parallel", "parallel", "arbitrary"),
            vmem_limit_bytes=vmem_limit,
        ),
    )(yp, yt)

    # combine per-(batch, chunk) partial sums; drop extra channels when c > 6
    inter = jnp.sum(sums[..., 0], axis=(0, 1))[:NUM_LABELS]   # (6,)
    total = jnp.sum(sums[..., 1], axis=(0, 1))[:NUM_LABELS]   # (6,)
    union = total - inter
    iou = (inter + SMOOTH) / (union + SMOOTH)
    return jnp.mean(iou)


def _reference(y_pred, y_true):
    """Pure-JAX reference mirroring the PyTorch module exactly."""
    score = 0.0
    for idx in range(NUM_LABELS):
        t = y_true[:, idx].astype(jnp.float32).reshape(-1)
        p = y_pred[:, idx].astype(jnp.float32).reshape(-1)
        inter = jnp.sum(t * p)
        total = jnp.sum(t + p)
        union = total - inter
        score = score + (inter + SMOOTH) / (union + SMOOTH)
    return score / NUM_LABELS


if __name__ == "__main__":
    key = jax.random.PRNGKey(0)
    k1, k2, k3, k4 = jax.random.split(key, 4)

    # main check: NCHW, C = 6 labels (numLabels hardcoded in forward)
    shape = (2, NUM_LABELS, 16, 16)
    y_pred = jax.nn.sigmoid(jax.random.normal(k1, shape, dtype=jnp.float32))
    y_true = (jax.random.uniform(k2, shape) > 0.5).astype(jnp.float32)
    out = jax.block_until_ready(mean_iou(y_pred, y_true))
    ref = jax.block_until_ready(_reference(y_pred, y_true))
    assert jnp.allclose(out, ref, rtol=1e-5, atol=1e-5), (out, ref)

    # ragged-tail + chunked-parallel path (odd batch, hw not a tile multiple)
    shape2 = (1, NUM_LABELS, 16, 17)
    y_pred2 = jax.nn.sigmoid(jax.random.normal(k3, shape2, dtype=jnp.float32))
    y_true2 = (jax.random.uniform(k4, shape2) > 0.5).astype(jnp.float32)
    out2 = jax.block_until_ready(mean_iou(y_pred2, y_true2, max_tile=128))
    ref2 = jax.block_until_ready(_reference(y_pred2, y_true2))
    assert jnp.allclose(out2, ref2, rtol=1e-5, atol=1e-5), (out2, ref2)

    print("KERNEL_OK")
</pallas_src>

<mosaic_0001>
module attributes {stable_mosaic.version = 11 : i64} {
  func.func @kernel(%arg0: i32, %arg1: i32, %arg2: i32, %arg3: memref<1x6x256xf32, #tpu.memory_space<vmem>>, %arg4: memref<1x6x256xf32, #tpu.memory_space<vmem>>, %arg5: memref<1x1x6x2xf32, #tpu.memory_space<vmem>>, %arg6: memref<6x1xf32, #tpu.memory_space<vmem>>, %arg7: memref<6x1xf32, #tpu.memory_space<vmem>>) attributes {dimension_semantics = [#tpu.dimension_semantics<parallel>, #tpu.dimension_semantics<parallel>, #tpu.dimension_semantics<arbitrary>], iteration_bounds = array<i64: 2, 1, 1>, scalar_prefetch = 0 : i64, scratch_operands = 2 : i64, tpu.core_type = #tpu.core_type<tc>, window_params = [{transform_indices = @transform_0, window_bounds = array<i64: 1, 6, 256>}, {transform_indices = @transform_1, window_bounds = array<i64: 1, 6, 256>}, {transform_indices = @transform_2, window_bounds = array<i64: 1, 1, 6, 2>}]} {
    %c0_i32 = arith.constant 0 : i32
    %0 = arith.cmpi eq, %arg2, %c0_i32 : i32
    %1 = arith.extui %0 : i1 to i32
    %c0_i32_0 = arith.constant 0 : i32
    %2 = arith.cmpi ne, %1, %c0_i32_0 : i32
    scf.if %2 {
      %cst_17 = arith.constant 0.000000e+00 : f32
      %22 = vector.broadcast %cst_17 : f32 to vector<6x1xf32>
      %c0_18 = arith.constant 0 : index
      %c0_19 = arith.constant 0 : index
      %23 = vector.load %arg6[%c0_18, %c0_19] : memref<6x1xf32, #tpu.memory_space<vmem>>, vector<6x1xf32>
      tpu.vector_store %arg6[%c0_18, %c0_19], %22 {strides = array<i32>} : memref<6x1xf32, #tpu.memory_space<vmem>>, vector<6x1xf32>,
      %cst_20 = arith.constant 0.000000e+00 : f32
      %24 = vector.broadcast %cst_20 : f32 to vector<6x1xf32>
      %c0_21 = arith.constant 0 : index
      %c0_22 = arith.constant 0 : index
      %25 = vector.load %arg7[%c0_21, %c0_22] : memref<6x1xf32, #tpu.memory_space<vmem>>, vector<6x1xf32>
      tpu.vector_store %arg7[%c0_21, %c0_22], %24 {strides = array<i32>} : memref<6x1xf32, #tpu.memory_space<vmem>>, vector<6x1xf32>,
    } else {
    }
    %c0 = arith.constant 0 : index
    %c0_1 = arith.constant 0 : index
    %c0_2 = arith.constant 0 : index
    %3 = vector.load %arg3[%c0, %c0_1, %c0_2] : memref<1x6x256xf32, #tpu.memory_space<vmem>>, vector<1x6x256xf32>
    %4 = vector.shape_cast %3 : vector<1x6x256xf32> to vector<6x256xf32>
    %c0_3 = arith.constant 0 : index
    %c0_4 = arith.constant 0 : index
    %c0_5 = arith.constant 0 : index
    %5 = vector.load %arg4[%c0_3, %c0_4, %c0_5] : memref<1x6x256xf32, #tpu.memory_space<vmem>>, vector<1x6x256xf32>
    %6 = vector.shape_cast %5 : vector<1x6x256xf32> to vector<6x256xf32>
    %c0_6 = arith.constant 0 : index
    %c0_7 = arith.constant 0 : index
    %7 = vector.load %arg6[%c0_6, %c0_7] : memref<6x1xf32, #tpu.memory_space<vmem>>, vector<6x1xf32>
    %8 = arith.mulf %6, %4 : vector<6x256xf32>
    %cst = arith.constant dense<0.000000e+00> : vector<6xf32>
    %9 = vector.multi_reduction <add>, %8, %cst [1] : vector<6x256xf32> to vector<6xf32>
    %10 = vector.shape_cast %9 : vector<6xf32> to vector<6x1xf32>
    %11 = arith.addf %7, %10 : vector<6x1xf32>
    %c0_8 = arith.constant 0 : index
    %c0_9 = arith.constant 0 : index
    %12 = vector.load %arg6[%c0_8, %c0_9] : memref<6x1xf32, #tpu.memory_space<vmem>>, vector<6x1xf32>
    tpu.vector_store %arg6[%c0_8, %c0_9], %11 {strides = array<i32>} : memref<6x1xf32, #tpu.memory_space<vmem>>, vector<6x1xf32>,
    %c0_10 = arith.constant 0 : index
    %c0_11 = arith.constant 0 : index
    %13 = vector.load %arg7[%c0_10, %c0_11] : memref<6x1xf32, #tpu.memory_space<vmem>>, vector<6x1xf32>
    %14 = arith.addf %6, %4 : vector<6x256xf32>
    %cst_12 = arith.constant dense<0.000000e+00> : vector<6xf32>
    %15 = vector.multi_reduction <add>, %14, %cst_12 [1] : vector<6x256xf32> to vector<6xf32>
    %16 = vector.shape_cast %15 : vector<6xf32> to vector<6x1xf32>
    %17 = arith.addf %13, %16 : vector<6x1xf32>
    %c0_13 = arith.constant 0 : index
    %c0_14 = arith.constant 0 : index
    %18 = vector.load %arg7[%c0_13, %c0_14] : memref<6x1xf32, #tpu.memory_space<vmem>>, vector<6x1xf32>
    tpu.vector_store %arg7[%c0_13, %c0_14], %17 {strides = array<i32>} : memref<6x1xf32, #tpu.memory_space<vmem>>, vector<6x1xf32>,
    %c0_i32_15 = arith.constant 0 : i32
    %19 = arith.cmpi eq, %arg2, %c0_i32_15 : i32
    %20 = arith.extui %19 : i1 to i32
    %c0_i32_16 = arith.constant 0 : i32
    %21 = arith.cmpi ne, %20, %c0_i32_16 : i32
    scf.if %21 {
      %c0_17 = arith.constant 0 : index
      %c0_18 = arith.constant 0 : index
      %22 = vector.load %arg6[%c0_17, %c0_18] : memref<6x1xf32, #tpu.memory_space<vmem>>, vector<6x1xf32>
      %c0_19 = arith.constant 0 : index
      %c0_20 = arith.constant 0 : index
      %c0_21 = arith.constant 0 : index
      %c0_22 = arith.constant 0 : index
      %23 = vector.load %arg5[%c0_19, %c0_20, %c0_21, %c0_22] : memref<1x1x6x2xf32, #tpu.memory_space<vmem>>, vector<1x1x6x1xf32>
      %24 = vector.shape_cast %23 : vector<1x1x6x1xf32> to vector<6x1xf32>
      %25 = vector.shape_cast %22 : vector<6x1xf32> to vector<1x1x6x1xf32>
      tpu.vector_store %arg5[%c0_19, %c0_20, %c0_21, %c0_22], %25 {strides = array<i32>} : memref<1x1x6x2xf32, #tpu.memory_space<vmem>>, vector<1x1x6x1xf32>,
      %c0_23 = arith.constant 0 : index
      %c0_24 = arith.constant 0 : index
      %26 = vector.load %arg7[%c0_23, %c0_24] : memref<6x1xf32, #tpu.memory_space<vmem>>, vector<6x1xf32>
      %c0_25 = arith.constant 0 : index
      %c0_26 = arith.constant 0 : index
      %c0_27 = arith.constant 0 : index
      %c1 = arith.constant 1 : index
      %27 = vector.load %arg5[%c0_25, %c0_26, %c0_27, %c1] : memref<1x1x6x2xf32, #tpu.memory_space<vmem>>, vector<1x1x6x1xf32>
      %28 = vector.shape_cast %27 : vector<1x1x6x1xf32> to vector<6x1xf32>
      %29 = vector.shape_cast %26 : vector<6x1xf32> to vector<1x1x6x1xf32>
      tpu.vector_store %arg5[%c0_25, %c0_26, %c0_27, %c1], %29 {strides = array<i32>} : memref<1x1x6x2xf32, #tpu.memory_space<vmem>>, vector<1x1x6x1xf32>,
    } else {
    }
    return
  }
  func.func @transform_0(%arg0: i32, %arg1: i32, %arg2: i32) -> (i32, i32, i32) {
    %c1_i32 = arith.constant 1 : i32
    %0 = arith.muli %arg1, %c1_i32 : i32
    %1 = arith.addi %0, %arg2 : i32
    %c0_i32 = arith.constant 0 : i32
    %c0_i32_0 = arith.constant 0 : i32
    return %arg0, %c0_i32, %1 : i32, i32, i32
  }
  func.func @transform_1(%arg0: i32, %arg1: i32, %arg2: i32) -> (i32, i32, i32) {
    %c1_i32 = arith.constant 1 : i32
    %0 = arith.muli %arg1, %c1_i32 : i32
    %1 = arith.addi %0, %arg2 : i32
    %c0_i32 = arith.constant 0 : i32
    %c0_i32_0 = arith.constant 0 : i32
    return %arg0, %c0_i32, %1 : i32, i32, i32
  }
  func.func @transform_2(%arg0: i32, %arg1: i32, %arg2: i32) -> (i32, i32, i32, i32) {
    %c0_i32 = arith.constant 0 : i32
    %c0_i32_0 = arith.constant 0 : i32
    %c0_i32_1 = arith.constant 0 : i32
    return %arg0, %arg1, %c0_i32, %c0_i32_0 : i32, i32, i32, i32
  }
}

</mosaic_0001>

<llo_original>
// kernel: tpu_custom_call.1
$region0: #{tpu_custom_call.1}
  #allocation0 [shape = 'u32[]', space=smem, size = 0x4, offset = 0x4, fixed_abs, tag = 'smem constant byte address 0x4 - core index']
  #allocation1 [shape = 'u32[144,128]{1,0:T(1,128)}', space=vmem, size = 0x12000, scoped, tag = 'internal scratch']
  #allocation2 [shape = 'f32[6,1]{1,0:T(8,128)}', space=vmem, size = 0x1000, scoped, tag = 'scratch operand']
  #allocation3 [shape = 'f32[6,1]{1,0:T(8,128)}', space=vmem, size = 0x1000, scoped, tag = 'scratch operand']
  %s0 = inlined_call_operand.vmem [shape: f32[2,6,256], index: 0, kind: input, shape index: {}]
  %s1 = inlined_call_operand.vmem [shape: f32[2,6,256], index: 1, kind: input, shape index: {}]
  %s2 = inlined_call_operand.vmem [shape: f32[2,1,6,2], index: 2, kind: output, shape index: {}]
  %s3 = sld [smem:[#allocation0]]
  $region49: #{tpu_custom_call.1} parent=0
    _
  %s5 = ssub.s32 1, %s3
  %s6 = scalar_select 0, %s5, %s3
  loop: start=0, step=1, limit=4
  $region2: #{tpu_custom_call.1} parent=0 // loop_pre_header
    _
  $region3: #{tpu_custom_call.1} parent=0 // loop_header
    %s8 = sphi 0, %s12
    %p9 = scmp.ge.s32.totalorder %s8, 4
    %s15 = sphi 0, %s34
    %s16 = sphi 0, %s30
    %s17 = sphi 0, %s26
    %s18 = sphi 0, %s15
    %s19 = sphi 0, %s16
    %s20 = sphi 0, %s17
    %s21 = sphi 0, %s18
    %s22 = sphi 0, %s19
    %s23 = sphi 0, %s20
    %s41 = sphi 0, %s43
    %s44 = sphi 0, %s41
    %s45 = sphi 0, %s44
    %s61 = sphi 0, %s45
    %s71 = sphi 0, %s73
    %s74 = sphi 0, %s71
    %s75 = sphi 0, %s74
    %s91 = sphi 0, %s75
    %s99 = sphi 0, %s101
    %s102 = sphi 0, %s99
    %s103 = sphi 0, %s102
    %s119 = sphi 0, %s103
  $region4: #{tpu_custom_call.1} parent=0 // loop_header_branch
    %11 = sbr.rel (%p9) target = $region8
  $region5: #{tpu_custom_call.1} parent=0 // loop_body
    %s13 = ssub.s32 %s8, 1
    %s14 = ssub.s32 %s8, 2
    %s24 = sadd.s32 1, %s17
    %p25 = scmp.ge.s32.totalorder %s24, 1
    %s26 = scalar_select %p25, 0, %s24
    %s27 = sadd.s32 1, %s16
    %s28 = scalar_select %p25, %s27, %s16
    %p29 = scmp.ge.s32.totalorder %s28, 1
    %s30 = scalar_select %p29, 0, %s28
    %s31 = sadd.s32 1, %s15
    %s32 = scalar_select %p29, %s31, %s15
    %p33 = scmp.ge.s32.totalorder %s32, 2
    %s34 = scalar_select %p33, 0, %s32
    %s35 = sadd.s32 %s16, %s17
    %s36 = sadd.s32 %s30, %s26
    %s37 = ssub.s32 %s15, %s34
    %s38 = ssub.s32 %s35, %s36
    %s39 = sor.u32 %s37, %s38
    %p40 = scmp.eq.s32.totalorder %s39, 0
    %s42 = sadd.s32 %s41, 1
    %s43 = scalar_select %p40, %s41, %s42
    %p46 = pneg %p40
    %p47 = scmp.eq.s32.totalorder %s8, 1
    %p48 = por %p46, %p47
    %p49 = scmp.ne.s32.totalorder %s41, %s44
    %p50 = scmp.eq.s32.totalorder %s8, 0
    %p51 = por %p49, %p50
    %p52 = scmp.ne.s32.totalorder %s41, %s44
    %p53 = scmp.eq.s32.totalorder %s13, 1
    %p54 = por %p52, %p53
    %p55 = scmp.ne.s32.totalorder %s44, %s45
    %p56 = scmp.eq.s32.totalorder %s13, 0
    %p57 = por %p55, %p56
    %p58 = scmp.ne.s32.totalorder %s44, %s45
    %p59 = scmp.eq.s32.totalorder %s14, 1
    %p60 = por %p58, %p59
    %p62 = scmp.ne.s32.totalorder %s45, %s61
    %p63 = scmp.eq.s32.totalorder %s14, 0
    %p64 = por %p62, %p63
    %s65 = sadd.s32 %s16, %s17
    %s66 = sadd.s32 %s30, %s26
    %s67 = ssub.s32 %s15, %s34
    %s68 = ssub.s32 %s65, %s66
    %s69 = sor.u32 %s67, %s68
    %p70 = scmp.eq.s32.totalorder %s69, 0
    %s72 = sadd.s32 %s71, 1
    %s73 = scalar_select %p70, %s71, %s72
    %p76 = pneg %p70
    %p77 = scmp.eq.s32.totalorder %s8, 1
    %p78 = por %p76, %p77
    %p79 = scmp.ne.s32.totalorder %s71, %s74
    %p80 = scmp.eq.s32.totalorder %s8, 0
    %p81 = por %p79, %p80
    %p82 = scmp.ne.s32.totalorder %s71, %s74
    %p83 = scmp.eq.s32.totalorder %s13, 1
    %p84 = por %p82, %p83
    %p85 = scmp.ne.s32.totalorder %s74, %s75
    %p86 = scmp.eq.s32.totalorder %s13, 0
    %p87 = por %p85, %p86
    %p88 = scmp.ne.s32.totalorder %s74, %s75
    %p89 = scmp.eq.s32.totalorder %s14, 1
    %p90 = por %p88, %p89
    %p92 = scmp.ne.s32.totalorder %s75, %s91
    %p93 = scmp.eq.s32.totalorder %s14, 0
    %p94 = por %p92, %p93
    %s95 = ssub.s32 %s15, %s34
    %s96 = ssub.s32 %s16, %s30
    %s97 = sor.u32 %s95, %s96
    %p98 = scmp.eq.s32.totalorder %s97, 0
    %s100 = sadd.s32 %s99, 1
    %s101 = scalar_select %p98, %s99, %s100
    %p104 = pneg %p98
    %p105 = scmp.eq.s32.totalorder %s8, 1
    %p106 = por %p104, %p105
    %p107 = scmp.ne.s32.totalorder %s99, %s102
    %p108 = scmp.eq.s32.totalorder %s8, 0
    %p109 = por %p107, %p108
    %p110 = scmp.ne.s32.totalorder %s99, %s102
    %p111 = scmp.eq.s32.totalorder %s13, 1
    %p112 = por %p110, %p111
    %p113 = scmp.ne.s32.totalorder %s102, %s103
    %p114 = scmp.eq.s32.totalorder %s13, 0
    %p115 = por %p113, %p114
    %p116 = scmp.ne.s32.totalorder %s102, %s103
    %p117 = scmp.eq.s32.totalorder %s14, 1
    %p118 = por %p116, %p117
    %p120 = scmp.ne.s32.totalorder %s103, %s119
    %p121 = scmp.eq.s32.totalorder %s14, 0
    %p122 = por %p120, %p121
    %p123 = scmp.le.s32.totalorder 1, %s8
    %p124 = scmp.lt.s32.totalorder %s8, 3
    %p125 = pnand %p123, %p124
    %p126 = pneg %p125
    // Predicated region
    $region9: #{tpu_custom_call.1} parent=5 // pred_check
      _
    $region10: #{tpu_custom_call.1} parent=5 // pred_check_branch
      %128 = sbr.rel (%p125) target = $region12
    $region11: #{tpu_custom_call.1} parent=5 // pred_region
      %s129 = ssub.s32 %s8, 1
    $region12: #{tpu_custom_call.1} parent=5 // pred_fallthru
      _
    %p130 = scmp.lt.s32.totalorder %s8, 2
    // Predicated region
    $region13: #{tpu_custom_call.1} parent=5 // pred_check
      %p131 = pneg %p130
    $region14: #{tpu_custom_call.1} parent=5 // pred_check_branch
      %133 = sbr.rel (%p131) target = $region16
    $region15: #{tpu_custom_call.1} parent=5 // pred_region
      // Predicated region
      $region17: #{tpu_custom_call.1} parent=15 // pred_check
        %p134 = pneg %p51
      $region18: #{tpu_custom_call.1} parent=15 // pred_check_branch
        %136 = sbr.rel (%p134) target = $region20
      $region19: #{tpu_custom_call.1} parent=15 // pred_region
        %s137 = sadd.s32 %s16, %s17
        %s138 = smul.u32 2, %s137
        %p139 = scmp.lt.s32.totalorder %s15, 1
        %s140 = scalar_select %p139, %s15, 1
        %p141 = scmp.lt.s32.totalorder %s138, 1
        %s142 = scalar_select %p141, %s138, 1
        %s143 = smul.addr %s140, 2
        %s144 = sadd.s32 %s142, %s143
        %s145 = smul.addr %s144, 8
        %s146 = scalar_lea.vmem %s0, %s145
        %s147 = sadd.s32 %s16, %s17
        %s148 = smul.u32 2, %s147
      $region20: #{tpu_custom_call.1} parent=15 // pred_fallthru
        _
      // Predicated region
      $region21: #{tpu_custom_call.1} parent=15 // pred_check
        %p149 = pneg %p81
      $region22: #{tpu_custom_call.1} parent=15 // pred_check_branch
        %151 = sbr.rel (%p149) target = $region24
      $region23: #{tpu_custom_call.1} parent=15 // pred_region
        %s152 = sadd.s32 %s16, %s17
        %s153 = smul.u32 2, %s152
        %p154 = scmp.lt.s32.totalorder %s15, 1
        %s155 = scalar_select %p154, %s15, 1
        %p156 = scmp.lt.s32.totalorder %s153, 1
        %s157 = scalar_select %p156, %s153, 1
        %s158 = smul.addr %s155, 2
        %s159 = sadd.s32 %s157, %s158
        %s160 = smul.addr %s159, 8
        %s161 = scalar_lea.vmem %s1, %s160
        %s162 = sadd.s32 %s16, %s17
        %s163 = smul.u32 2, %s162
      $region24: #{tpu_custom_call.1} parent=15 // pred_fallthru
        _
    $region16: #{tpu_custom_call.1} parent=5 // pred_fallthru
      _
    %p164 = scmp.le.s32.totalorder 1, %s8
    %p165 = scmp.lt.s32.totalorder %s8, 3
    %p166 = pnand %p164, %p165
    %p167 = pneg %p166
    // Predicated region
    $region25: #{tpu_custom_call.1} parent=5 // pred_check
      _
    $region26: #{tpu_custom_call.1} parent=5 // pred_check_branch
      %169 = sbr.rel (%p166) target = $region28
    $region27: #{tpu_custom_call.1} parent=5 // pred_region
      %s170 = ssub.s32 %s8, 1
      %s171 = sadd.s32 %s19, %s20
      %s172 = smul.u32 2, %s171
      %p173 = scmp.lt.s32.totalorder %s18, 1
      %s174 = scalar_select %p173, %s18, 1
      %p175 = scmp.lt.s32.totalorder %s172, 1
      %s176 = scalar_select %p175, %s172, 1
      %s177 = smul.addr %s174, 2
      %s178 = sadd.s32 %s176, %s177
      %s179 = smul.addr %s178, 8
      %s180 = scalar_lea.vmem %s0, %s179
      %p181 = pneg %p57
      %p182 = pneg %p54
      %s183 = sadd.s32 %s19, %s20
      %s184 = smul.u32 2, %s183
      %p185 = scmp.lt.s32.totalorder %s18, 1
      %s186 = scalar_select %p185, %s18, 1
      %p187 = scmp.lt.s32.totalorder %s184, 1
      %s188 = scalar_select %p187, %s184, 1
      %s189 = smul.addr %s186, 2
      %s190 = sadd.s32 %s188, %s189
      %s191 = smul.addr %s190, 8
      %s192 = scalar_lea.vmem %s1, %s191
      %p193 = pneg %p87
      %p194 = pneg %p84
      %p195 = pneg %p115
      %p196 = pneg %p112
      %p197 = scmp.lt.s32.totalorder %s18, 1
      %s198 = scalar_select %p197, %s18, 1
      %p199 = scmp.lt.s32.totalorder %s19, 0
      %s200 = scalar_select %p199, %s19, 0
      %s201 = sadd.s32 %s200, %s198
      %s202 = smul.addr %s201, 8
      %s203 = scalar_lea.vmem %s2, %s202
      %s204 = sadd.s32 %s19, %s20
      %s205 = smul.u32 2, %s204
      %p206 = scmp.lt.s32.totalorder %s18, 1
      %s207 = scalar_select %p206, %s18, 1
      %p208 = scmp.lt.s32.totalorder %s205, 1
      %s209 = scalar_select %p208, %s205, 1
      %s210 = smul.addr %s207, 2
      %s211 = sadd.s32 %s209, %s210
      %s212 = smul.addr %s211, 8
      %s213 = scalar_lea.vmem %s0, %s212
      %s214 = sadd.s32 %s19, %s20
      %s215 = smul.u32 2, %s214
      %s216 = sadd.s32 %s19, %s20
      %s217 = smul.u32 2, %s216
      %p218 = scmp.lt.s32.totalorder %s18, 1
      %s219 = scalar_select %p218, %s18, 1
      %p220 = scmp.lt.s32.totalorder %s217, 1
      %s221 = scalar_select %p220, %s217, 1
      %s222 = smul.addr %s219, 2
      %s223 = sadd.s32 %s221, %s222
      %s224 = smul.addr %s223, 8
      %s225 = scalar_lea.vmem %s1, %s224
      %s226 = sadd.s32 %s19, %s20
      %s227 = smul.u32 2, %s226
      %p228 = scmp.lt.s32.totalorder %s18, 1
      %s229 = scalar_select %p228, %s18, 1
      %p230 = scmp.lt.s32.totalorder %s19, 0
      %s231 = scalar_select %p230, %s19, 0
      %s232 = sadd.s32 %s231, %s229
      %s233 = smul.addr %s232, 8
      %s234 = scalar_lea.vmem %s2, %s233
      %p235 = scmp.eq.s32.totalorder %s20, 0
      // Predicated region
      $region29: #{tpu_custom_call.1} parent=27 // pred_check
        %p236 = pneg %p235
      $region30: #{tpu_custom_call.1} parent=27 // pred_check_branch
        %238 = sbr.rel (%p236) target = $region32
      $region31: #{tpu_custom_call.1} parent=27 // pred_region
        %vm239 = vcmask 5120
        %240 = vst.msk [vmem:[#allocation2] sm:$0x3f] %vm239, 0.0
        %241 = vst.msk [vmem:[#allocation3] sm:$0x3f] %vm239, 0.0
      $region32: #{tpu_custom_call.1} parent=27 // pred_fallthru
        _
      %v242 = vld [vmem:[%s213] sm:$0x3f]
      %v243 = vld [vmem:[%s213 + $0x8] sm:$0x3f]
      %v244 = vld [vmem:[%s225] sm:$0x3f]
      %v245 = vld [vmem:[%s225 + $0x8] sm:$0x3f]
      %v246 = vld [vmem:[#allocation2] sm:$0x3f]
      %v247 = vmul.f32 %v244, %v242
      %v248 = vmul.f32 %v245, %v243
      %vm249 = vcmask 1045504
      %v250 = vsel %vm249, %v247, 0.0
      %v251 = vsel %vm249, %v248, 0.0
      %v252 = vadd.f32 %v250, %v251
      %253 = vadd.xlane.f32.xlu0 %v252
      %v254 = vpop.xlane.xlu0 %253
      %v255 = vadd.f32 %v246, %v254
      %vm256 = vcmask 5120
      %257 = vst.msk [vmem:[#allocation2] sm:$0x3f] %vm256, %v255
      %v258 = vld [vmem:[#allocation3] sm:$0x3f]
      %v259 = vadd.f32 %v244, %v242
      %v260 = vadd.f32 %v245, %v243
      %v261 = vsel %vm249, %v259, 0.0
      %v262 = vsel %vm249, %v260, 0.0
      %v263 = vadd.f32 %v261, %v262
      %264 = vadd.xlane.f32.xlu0 %v263
      %v265 = vpop.xlane.xlu0 %264
      %v266 = vadd.f32 %v258, %v265
      %267 = vst.msk [vmem:[#allocation3] sm:$0x3f] %vm256, %v266
      // Predicated region
      $region33: #{tpu_custom_call.1} parent=27 // pred_check
        %p268 = pneg %p235
      $region34: #{tpu_custom_call.1} parent=27 // pred_check_branch
        %270 = sbr.rel (%p268) target = $region36
      $region35: #{tpu_custom_call.1} parent=27 // pred_region
        %v271 = vld [vmem:[#allocation2] sm:$0x3f]
        %272 = vst.msk [vmem:[%s234] sm:$0x3f] %vm256, %v271
        %v273 = vld [vmem:[#allocation3] sm:$0x3f]
        %275 = vrot.lane.b32.xlu0 %v273, 1
        %v276 = vpop.permute.xlu0 %275
        %vm278 = vcmask 13320
        %279 = vst.msk [vmem:[%s234] sm:$0x3f] %vm278, %v276
      $region36: #{tpu_custom_call.1} parent=27 // pred_fallthru
        _
      %p280 = scmp.lt.s32.totalorder %s18, 1
      %s281 = scalar_select %p280, %s18, 1
      %p282 = scmp.lt.s32.totalorder %s19, 0
      %s283 = scalar_select %p282, %s19, 0
      %s284 = sadd.s32 %s283, %s281
      %s285 = smul.addr %s284, 8
      %s286 = scalar_lea.vmem %s2, %s285
      // Predicated region
      $region37: #{tpu_custom_call.1} parent=27 // pred_check
        %p287 = pneg %p112
      $region38: #{tpu_custom_call.1} parent=27 // pred_check_branch
        %289 = sbr.rel (%p287) target = $region40
      $region39: #{tpu_custom_call.1} parent=27 // pred_region
        _
      $region40: #{tpu_custom_call.1} parent=27 // pred_fallthru
        _
    $region28: #{tpu_custom_call.1} parent=5 // pred_fallthru
      _
    %p290 = scmp.le.s32.totalorder 2, %s8
    // Predicated region
    $region41: #{tpu_custom_call.1} parent=5 // pred_check
      %p291 = pneg %p290
    $region42: #{tpu_custom_call.1} parent=5 // pred_check_branch
      %293 = sbr.rel (%p291) target = $region44
    $region43: #{tpu_custom_call.1} parent=5 // pred_region
      %s294 = ssub.s32 %s8, 2
      // Predicated region
      $region45: #{tpu_custom_call.1} parent=43 // pred_check
        %p295 = pneg %p118
      $region46: #{tpu_custom_call.1} parent=43 // pred_check_branch
        %297 = sbr.rel (%p295) target = $region48
      $region47: #{tpu_custom_call.1} parent=43 // pred_region
        %p298 = scmp.lt.s32.totalorder %s21, 1
        %s299 = scalar_select %p298, %s21, 1
        %p300 = scmp.lt.s32.totalorder %s22, 0
        %s301 = scalar_select %p300, %s22, 0
        %s302 = sadd.s32 %s301, %s299
        %s303 = smul.addr %s302, 8
        %s304 = scalar_lea.vmem %s2, %s303
      $region48: #{tpu_custom_call.1} parent=43 // pred_fallthru
        _
    $region44: #{tpu_custom_call.1} parent=5 // pred_fallthru
      _
  $region6: #{tpu_custom_call.1} parent=0 // loop_footer
    %s12 = sadd.s32 1, %s8
  $region7: #{tpu_custom_call.1} parent=0 // loop_footer_branch
    %7 = sbr.rel target = $region3
  $region8: #{tpu_custom_call.1} parent=0 // loop_exit
    _

</llo_original>
